<compile_context>
chip_gen: v7x
topology: tpu7x:2x2x1
jax: 0.10.0
libtpu: 0.0.40
codegen_flags: <defaults>
</compile_context>

<pallas_src>
import functools

import jax
import jax.numpy as jnp
from jax.experimental import pallas as pl
from jax.experimental.pallas import tpu as pltpu

INPUT_SIZE = 3 * 32 * 32  # 3072
_DEFAULT_TILE_N = 1024    # (1024, 3072) f32 = 12 MiB; x2 buffers = 24 MiB


def _round_up(x, m):
    return ((x + m - 1) // m) * m


def _linear_kernel(x_ref, w_ref, b_ref, o_ref):
    # x_ref: (TILE_N, D) f32 VMEM (streamed tile)
    # w_ref: (1, D)      f32 VMEM (lane-dense, resident across grid)
    # b_ref: (1, 1)      f32 SMEM (scalar bias)
    # o_ref: (TILE_N, 1) f32 VMEM
    prod = x_ref[...] * w_ref[...]                       # VPU broadcast-multiply
    o_ref[...] = jnp.sum(prod, axis=-1, keepdims=True) + b_ref[0, 0]  # XLU reduce


@functools.partial(jax.jit, static_argnames=("tile_n",))
def linear_regression_forward(x, w, b, *, tile_n=_DEFAULT_TILE_N):
    """x: (N, 3072) f32, w: (1, 3072) f32, b: (1, 1) f32 -> (N, 1) f32."""
    n, d = x.shape

    # Pick the batch tile: multiple of 8 (sublane), capped at tile_n.  For
    # batches that would otherwise collapse to a single tile, split in two so a
    # megacore (v7x) can shard the grid across both TensorCores.
    tn = min(tile_n, _round_up(n, 8))
    if n <= tn and n >= 16:
        tn = _round_up((n + 1) // 2, 8)
    num_tiles = pl.cdiv(n, tn)           # ragged last block handled by Pallas

    # Scoped VMEM: double-buffered x tile + weight + output + margin, capped so
    # v7x (64 MiB physical) keeps compiler scratch headroom.
    vmem_limit = min(48 << 20, 2 * tn * d * 4 + (16 << 20))

    cost = pl.CostEstimate(
        flops=2 * n * d,
        transcendentals=0,
        bytes_accessed=n * d * 4 + d * 4 + n * 4,
    )

    out = pl.pallas_call(
        _linear_kernel,
        out_shape=jax.ShapeDtypeStruct((n, 1), jnp.float32),
        grid_spec=pl.GridSpec(
            grid=(num_tiles,),
            in_specs=[
                # x: streamed row tiles -> double-buffered DMA pipeline.
                pl.BlockSpec((tn, d), lambda i: (i, 0)),
                # w: lane-dense (1, D), same block every step -> stays resident.
                pl.BlockSpec((1, d), lambda i: (0, 0)),
                # bias: single scalar in SMEM (no padded VMEM tile).
                pl.BlockSpec(memory_space=pltpu.MemorySpace.SMEM),
            ],
            out_specs=pl.BlockSpec((tn, 1), lambda i: (i, 0)),
        ),
        compiler_params=pltpu.CompilerParams(
            # Row tiles are independent -> megacore sharding on v7x.
            dimension_semantics=("parallel",),
            vmem_limit_bytes=vmem_limit,
        ),
        cost_estimate=cost,
    )(x, w, b)

    return out


if __name__ == "__main__":
    key = jax.random.PRNGKey(0)
    kx, kw, kb = jax.random.split(key, 3)

    batch = 8
    # Input already flattened to (N, 3*32*32), matching the module's forward.
    x = jax.random.normal(kx, (batch, INPUT_SIZE), dtype=jnp.float32)

    # Deterministic init mimicking nn.Linear's uniform(-1/sqrt(fan_in), ...).
    bound = 1.0 / jnp.sqrt(jnp.float32(INPUT_SIZE))
    # Weight stored lane-dense as (1, 3072)  (== nn.Linear weight of shape (1, in)).
    w = jax.random.uniform(kw, (1, INPUT_SIZE), dtype=jnp.float32,
                           minval=-bound, maxval=bound)
    b = jax.random.uniform(kb, (1, 1), dtype=jnp.float32,
                           minval=-bound, maxval=bound)

    out = linear_regression_forward(x, w, b)
    out = jax.block_until_ready(out)

    # Reference check in plain JAX (x @ W^T + b).
    ref = x @ w.T + b
    assert out.shape == (batch, 1)
    assert jnp.allclose(out, ref, atol=1e-4, rtol=1e-4)

    # TODO(synk): train/accuracy/predict methods of the module are training-time
    # utilities, not part of the forward pass, and are intentionally not ported.
    print("KERNEL_OK")
</pallas_src>

<mosaic_0001>
module attributes {stable_mosaic.version = 11 : i64} {
  func.func @_linear_kernel(%arg0: i32, %arg1: memref<8x3072xf32, #tpu.memory_space<vmem>>, %arg2: memref<1x3072xf32, #tpu.memory_space<vmem>>, %arg3: memref<1x1xf32, #tpu.memory_space<smem>>, %arg4: memref<8x1xf32, #tpu.memory_space<vmem>>) attributes {dimension_semantics = [#tpu.dimension_semantics<parallel>], iteration_bounds = array<i64: 1>, scalar_prefetch = 0 : i64, scratch_operands = 0 : i64, tpu.core_type = #tpu.core_type<tc>, window_params = [{transform_indices = @transform_0, window_bounds = array<i64: 8, 3072>}, {pipeline_mode = #tpu.pipeline_mode<synchronous>, transform_indices = @transform_1, window_bounds = array<i64: 1, 3072>}, {transform_indices = @transform_2, window_bounds = array<i64: 1, 1>}, {transform_indices = @transform_3, window_bounds = array<i64: 8, 1>}]} {
    %c0 = arith.constant 0 : index
    %c0_0 = arith.constant 0 : index
    %0 = vector.load %arg1[%c0, %c0_0] : memref<8x3072xf32, #tpu.memory_space<vmem>>, vector<8x3072xf32>
    %c0_1 = arith.constant 0 : index
    %c0_2 = arith.constant 0 : index
    %1 = vector.load %arg2[%c0_1, %c0_2] : memref<1x3072xf32, #tpu.memory_space<vmem>>, vector<1x3072xf32>
    %2 = vector.broadcast %1 : vector<1x3072xf32> to vector<8x3072xf32>
    %3 = arith.mulf %0, %2 : vector<8x3072xf32>
    %cst = arith.constant dense<0.000000e+00> : vector<8xf32>
    %4 = vector.multi_reduction <add>, %3, %cst [1] : vector<8x3072xf32> to vector<8xf32>
    %5 = vector.shape_cast %4 : vector<8xf32> to vector<8x1xf32>
    %c0_3 = arith.constant 0 : index
    %c0_4 = arith.constant 0 : index
    %6 = memref.load %arg3[%c0_3, %c0_4] : memref<1x1xf32, #tpu.memory_space<smem>>
    %7 = vector.broadcast %6 : f32 to vector<8x1xf32>
    %8 = arith.addf %5, %7 : vector<8x1xf32>
    %c0_5 = arith.constant 0 : index
    %c0_6 = arith.constant 0 : index
    %9 = vector.load %arg4[%c0_5, %c0_6] : memref<8x1xf32, #tpu.memory_space<vmem>>, vector<8x1xf32>
    tpu.vector_store %arg4[%c0_5, %c0_6], %8 {strides = array<i32>} : memref<8x1xf32, #tpu.memory_space<vmem>>, vector<8x1xf32>,
    return
  }
  func.func @transform_0(%arg0: i32) -> (i32, i32) {
    %c0_i32 = arith.constant 0 : i32
    %c0_i32_0 = arith.constant 0 : i32
    return %arg0, %c0_i32 : i32, i32
  }
  func.func @transform_1(%arg0: i32) -> (i32, i32) {
    %c0_i32 = arith.constant 0 : i32
    %c0_i32_0 = arith.constant 0 : i32
    %c0_i32_1 = arith.constant 0 : i32
    return %c0_i32, %c0_i32_0 : i32, i32
  }
  func.func @transform_2(%arg0: i32) -> (i32, i32) {
    %c0_i32 = arith.constant 0 : i32
    %c0_i32_0 = arith.constant 0 : i32
    %c0_i32_1 = arith.constant 0 : i32
    return %c0_i32, %c0_i32_0 : i32, i32
  }
  func.func @transform_3(%arg0: i32) -> (i32, i32) {
    %c0_i32 = arith.constant 0 : i32
    %c0_i32_0 = arith.constant 0 : i32
    return %arg0, %c0_i32 : i32, i32
  }
}

</mosaic_0001>

<llo_original>
// kernel: linear_regression_forward.1
$region0: #{linear_regression_forward.1}
  #allocation0 [shape = 'u32[]', space=smem, size = 0x4, offset = 0x4, fixed_abs, tag = 'smem constant byte address 0x4 - core index']
  #allocation1 [shape = 'u32[144,128]{1,0:T(1,128)}', space=vmem, size = 0x12000, scoped, tag = 'internal scratch']
  #allocation2 [shape = 'f32[1,1]{1,0:T(1,128)S(6)}', space=smem, size = 0x200, scoped, tag = 'scoped memory for linear_regression_forward.1']
  %s0 = inlined_call_operand.hbm [shape: f32[8,3072], index: 0, kind: input, shape index: {}]
  %s1 = inlined_call_operand.hbm [shape: f32[1,3072], index: 1, kind: input, shape index: {}]
  %s2 = inlined_call_operand.<no memory space> [shape: f32[1,1], index: 2, kind: input, shape index: {}]
  %s3 = inlined_call_operand.vmem [shape: f32[8,1], index: 3, kind: output, shape index: {}]
  %s4 = sld [smem:[#allocation0]]
  $region30: #{linear_regression_forward.1} parent=0
    _
  %s6 = ssub.s32 1, %s4
  %s7 = scalar_select 0, %s6, %s4
  %8 = sst [smem:[#allocation2]] %s2
  $region1: #{linear_regression_forward.1} parent=0
    #allocation3 [shape = 'u8[98304]{0}', space=vmem, size = 0x18000, scoped, tag = 'input window, operand 0, single buffered']
    #allocation4 [shape = 's32[1]{0}', space=sflag, size = 0x4, scoped, tag = 'scoped memory for linear_regression_forward.1']
    #allocation5 [shape = 'u8[12288]{0}', space=vmem, size = 0x3000, scoped, tag = 'input window, operand 1, single buffered']
    #allocation6 [shape = 's32[1]{0}', space=sflag, size = 0x4, scoped, tag = 'scoped memory for linear_regression_forward.1']
    %9 = vsyncpa [#allocation4], 0
    %10 = vsyncpa [#allocation6], 0
    // Predicated region
    $region2: #{linear_regression_forward.1} parent=1 // pred_check
      _
    $region3: #{linear_regression_forward.1} parent=1 // pred_check_branch
      %12 = sbr.rel (0) target = $region5
    $region4: #{linear_regression_forward.1} parent=1 // pred_region
      %s14 = ssub.s32 3072, 3072
      %15 = vsyncadd [#allocation4], %s14
      %s17 = sshll.u32 [#allocation3], 4
      %s18 = int_to_ptr.vmem [resolvable:$true] %s17
      %20 = dma.hbm_to_vmem [thread:$0]  %s0, 3072, %s18, [#allocation4]
    $region5: #{linear_regression_forward.1} parent=1 // pred_fallthru
      _
    // Predicated region
    $region6: #{linear_regression_forward.1} parent=1 // pred_check
      _
    $region7: #{linear_regression_forward.1} parent=1 // pred_check_branch
      %22 = sbr.rel (0) target = $region9
    $region8: #{linear_regression_forward.1} parent=1 // pred_region
      %s24 = ssub.s32 384, 384
      %25 = vsyncadd [#allocation6], %s24
      %s27 = sshll.u32 [#allocation5], 4
      %s28 = int_to_ptr.vmem [resolvable:$true] %s27
      %30 = dma.hbm_to_vmem [thread:$0]  %s1, 384, %s28, [#allocation6]
    $region9: #{linear_regression_forward.1} parent=1 // pred_fallthru
      _
    // Predicated region
    $region10: #{linear_regression_forward.1} parent=1 // pred_check
      _
    $region11: #{linear_regression_forward.1} parent=1 // pred_check_branch
      %32 = sbr.rel (0) target = $region13
    $region12: #{linear_regression_forward.1} parent=1 // pred_region
      _
    $region13: #{linear_regression_forward.1} parent=1 // pred_fallthru
      _
    // Predicated region
    $region14: #{linear_regression_forward.1} parent=1 // pred_check
      _
    $region15: #{linear_regression_forward.1} parent=1 // pred_check_branch
      %34 = sbr.rel (0) target = $region17
    $region16: #{linear_regression_forward.1} parent=1 // pred_region
      %35 = dma.done [#allocation4], 3072
    $region17: #{linear_regression_forward.1} parent=1 // pred_fallthru
      _
    // Predicated region
    $region18: #{linear_regression_forward.1} parent=1 // pred_check
      _
    $region19: #{linear_regression_forward.1} parent=1 // pred_check_branch
      %37 = sbr.rel (0) target = $region21
    $region20: #{linear_regression_forward.1} parent=1 // pred_region
      %38 = dma.done [#allocation6], 384
    $region21: #{linear_regression_forward.1} parent=1 // pred_fallthru
      _
    %v39 = vld [vmem:[#allocation3] sm:$0xff]
    %v40 = vld [vmem:[#allocation3 + $0x8] sm:$0xff]
    %v41 = vld [vmem:[#allocation3 + $0x10] sm:$0xff]
    %v42 = vld [vmem:[#allocation3 + $0x18] sm:$0xff]
    %v43 = vld [vmem:[#allocation3 + $0x20] sm:$0xff]
    %v44 = vld [vmem:[#allocation3 + $0x28] sm:$0xff]
    %v45 = vld [vmem:[#allocation3 + $0x30] sm:$0xff]
    %v46 = vld [vmem:[#allocation3 + $0x38] sm:$0xff]
    %v47 = vld [vmem:[#allocation3 + $0x40] sm:$0xff]
    %v48 = vld [vmem:[#allocation3 + $0x48] sm:$0xff]
    %v49 = vld [vmem:[#allocation3 + $0x50] sm:$0xff]
    %v50 = vld [vmem:[#allocation3 + $0x58] sm:$0xff]
    %v51 = vld [vmem:[#allocation3 + $0x60] sm:$0xff]
    %v52 = vld [vmem:[#allocation3 + $0x68] sm:$0xff]
    %v53 = vld [vmem:[#allocation3 + $0x70] sm:$0xff]
    %v54 = vld [vmem:[#allocation3 + $0x78] sm:$0xff]
    %v55 = vld [vmem:[#allocation3 + $0x80] sm:$0xff]
    %v56 = vld [vmem:[#allocation3 + $0x88] sm:$0xff]
    %v57 = vld [vmem:[#allocation3 + $0x90] sm:$0xff]
    %v58 = vld [vmem:[#allocation3 + $0x98] sm:$0xff]
    %v59 = vld [vmem:[#allocation3 + $0xa0] sm:$0xff]
    %v60 = vld [vmem:[#allocation3 + $0xa8] sm:$0xff]
    %v61 = vld [vmem:[#allocation3 + $0xb0] sm:$0xff]
    %v62 = vld [vmem:[#allocation3 + $0xb8] sm:$0xff]
    %v63 = vld [vmem:[#allocation5] sm:$0xff]
    %v64 = vld [vmem:[#allocation5 + $0x8] sm:$0xff]
    %v65 = vld [vmem:[#allocation5 + $0x10] sm:$0xff]
    %v69 = vlaneseq
    %v70 = vshrl.u32 %v69, 7
    %v71 = vsub.s32 0, %v70
    %v72 = vrot.slane %v63, %v71
    %v73 = vlaneseq
    %v74 = vshrl.u32 %v73, 7
    %v75 = vsub.s32 1, %v74
    %v76 = vrot.slane %v63, %v75
    %v77 = vlaneseq
    %v78 = vshrl.u32 %v77, 7
    %v79 = vsub.s32 2, %v78
    %v80 = vrot.slane %v63, %v79
    %v81 = vlaneseq
    %v82 = vshrl.u32 %v81, 7
    %v83 = vsub.s32 3, %v82
    %v84 = vrot.slane %v63, %v83
    %v85 = vlaneseq
    %v86 = vshrl.u32 %v85, 7
    %v87 = vsub.s32 4, %v86
    %v88 = vrot.slane %v63, %v87
    %v89 = vlaneseq
    %v90 = vshrl.u32 %v89, 7
    %v91 = vsub.s32 5, %v90
    %v92 = vrot.slane %v63, %v91
    %v93 = vlaneseq
    %v94 = vshrl.u32 %v93, 7
    %v95 = vsub.s32 6, %v94
    %v96 = vrot.slane %v63, %v95
    %v97 = vlaneseq
    %v98 = vshrl.u32 %v97, 7
    %v99 = vsub.s32 7, %v98
    %v100 = vrot.slane %v63, %v99
    %v101 = vlaneseq
    %v102 = vshrl.u32 %v101, 7
    %v103 = vsub.s32 0, %v102
    %v104 = vrot.slane %v64, %v103
    %v105 = vlaneseq
    %v106 = vshrl.u32 %v105, 7
    %v107 = vsub.s32 1, %v106
    %v108 = vrot.slane %v64, %v107
    %v109 = vlaneseq
    %v110 = vshrl.u32 %v109, 7
    %v111 = vsub.s32 2, %v110
    %v112 = vrot.slane %v64, %v111
    %v113 = vlaneseq
    %v114 = vshrl.u32 %v113, 7
    %v115 = vsub.s32 3, %v114
    %v116 = vrot.slane %v64, %v115
    %v117 = vlaneseq
    %v118 = vshrl.u32 %v117, 7
    %v119 = vsub.s32 4, %v118
    %v120 = vrot.slane %v64, %v119
    %v121 = vlaneseq
    %v122 = vshrl.u32 %v121, 7
    %v123 = vsub.s32 5, %v122
    %v124 = vrot.slane %v64, %v123
    %v125 = vlaneseq
    %v126 = vshrl.u32 %v125, 7
    %v127 = vsub.s32 6, %v126
    %v128 = vrot.slane %v64, %v127
    %v129 = vlaneseq
    %v130 = vshrl.u32 %v129, 7
    %v131 = vsub.s32 7, %v130
    %v132 = vrot.slane %v64, %v131
    %v133 = vlaneseq
    %v134 = vshrl.u32 %v133, 7
    %v135 = vsub.s32 0, %v134
    %v136 = vrot.slane %v65, %v135
    %v137 = vlaneseq
    %v138 = vshrl.u32 %v137, 7
    %v139 = vsub.s32 1, %v138
    %v140 = vrot.slane %v65, %v139
    %v141 = vlaneseq
    %v142 = vshrl.u32 %v141, 7
    %v143 = vsub.s32 2, %v142
    %v144 = vrot.slane %v65, %v143
    %v145 = vlaneseq
    %v146 = vshrl.u32 %v145, 7
    %v147 = vsub.s32 3, %v146
    %v148 = vrot.slane %v65, %v147
    %v149 = vlaneseq
    %v150 = vshrl.u32 %v149, 7
    %v151 = vsub.s32 4, %v150
    %v152 = vrot.slane %v65, %v151
    %v153 = vlaneseq
    %v154 = vshrl.u32 %v153, 7
    %v155 = vsub.s32 5, %v154
    %v156 = vrot.slane %v65, %v155
    %v157 = vlaneseq
    %v158 = vshrl.u32 %v157, 7
    %v159 = vsub.s32 6, %v158
    %v160 = vrot.slane %v65, %v159
    %v161 = vlaneseq
    %v162 = vshrl.u32 %v161, 7
    %v163 = vsub.s32 7, %v162
    %v164 = vrot.slane %v65, %v163
    %v189 = vmul.f32 %v39, %v72
    %v190 = vmul.f32 %v40, %v76
    %v191 = vmul.f32 %v41, %v80
    %v192 = vmul.f32 %v42, %v84
    %v193 = vmul.f32 %v43, %v88
    %v194 = vmul.f32 %v44, %v92
    %v195 = vmul.f32 %v45, %v96
    %v196 = vmul.f32 %v46, %v100
    %v197 = vmul.f32 %v47, %v104
    %v198 = vmul.f32 %v48, %v108
    %v199 = vmul.f32 %v49, %v112
    %v200 = vmul.f32 %v50, %v116
    %v201 = vmul.f32 %v51, %v120
    %v202 = vmul.f32 %v52, %v124
    %v203 = vmul.f32 %v53, %v128
    %v204 = vmul.f32 %v54, %v132
    %v205 = vmul.f32 %v55, %v136
    %v206 = vmul.f32 %v56, %v140
    %v207 = vmul.f32 %v57, %v144
    %v208 = vmul.f32 %v58, %v148
    %v209 = vmul.f32 %v59, %v152
    %v210 = vmul.f32 %v60, %v156
    %v211 = vmul.f32 %v61, %v160
    %v212 = vmul.f32 %v62, %v164
    %v213 = vadd.f32 %v189, %v190
    %v214 = vadd.f32 %v213, %v191
    %v215 = vadd.f32 %v214, %v192
    %v216 = vadd.f32 %v215, %v193
    %v217 = vadd.f32 %v216, %v194
    %v218 = vadd.f32 %v217, %v195
    %v219 = vadd.f32 %v218, %v196
    %v220 = vadd.f32 %v219, %v197
    %v221 = vadd.f32 %v220, %v198
    %v222 = vadd.f32 %v221, %v199
    %v223 = vadd.f32 %v222, %v200
    %v224 = vadd.f32 %v223, %v201
    %v225 = vadd.f32 %v224, %v202
    %v226 = vadd.f32 %v225, %v203
    %v227 = vadd.f32 %v226, %v204
    %v228 = vadd.f32 %v227, %v205
    %v229 = vadd.f32 %v228, %v206
    %v230 = vadd.f32 %v229, %v207
    %v231 = vadd.f32 %v230, %v208
    %v232 = vadd.f32 %v231, %v209
    %v233 = vadd.f32 %v232, %v210
    %v234 = vadd.f32 %v233, %v211
    %v235 = vadd.f32 %v234, %v212
    %236 = vadd.xlane.f32.xlu0 %v235
    %v237 = vpop.xlane.xlu0 %236
    %s238 = sld [smem:[#allocation2]]
    %v239 = vstv %s238
    %v240 = vadd.f32 %v237, %v239
    %vm241 = vcmask 7168
    %242 = vst.msk [vmem:[%s3] sm:$0xff] %vm241, %v240
    // Predicated region
    $region22: #{linear_regression_forward.1} parent=1 // pred_check
      _
    $region23: #{linear_regression_forward.1} parent=1 // pred_check_branch
      %244 = sbr.rel (0) target = $region25
    $region24: #{linear_regression_forward.1} parent=1 // pred_region
      _
    $region25: #{linear_regression_forward.1} parent=1 // pred_fallthru
      _
    // Predicated region
    $region26: #{linear_regression_forward.1} parent=1 // pred_check
      _
    $region27: #{linear_regression_forward.1} parent=1 // pred_check_branch
      %246 = sbr.rel (0) target = $region29
    $region28: #{linear_regression_forward.1} parent=1 // pred_region
      _
    $region29: #{linear_regression_forward.1} parent=1 // pred_fallthru
      _
    %247 = vsyncpa [#allocation4], 1
    %248 = vsyncpa [#allocation6], 1

</llo_original>
